<compile_context>
chip_gen: v7x
topology: tpu7x:2x2x1
jax: 0.10.0
libtpu: 0.0.40
codegen_flags: <defaults>
</compile_context>

<pallas_src>
import math

import jax
import jax.numpy as jnp
from jax.experimental import pallas as pl
from jax.experimental.pallas import tpu as pltpu


def _round_up(x, m):
    return (x + m - 1) // m * m


def _embed_kernel(x_ref, w_ref, b_ref, o_ref):
    # x_ref: (tm, k_eff), w_ref: (k_eff, n_eff), b_ref: (1, n_eff), o_ref: (tm, n_eff)
    tm = x_ref.shape[0]
    k_eff, n_eff = w_ref.shape

    x = x_ref[...].astype(jnp.float32)
    w = w_ref[...].astype(jnp.float32)
    b = b_ref[...].astype(jnp.float32)

    # VPU outer-product accumulate: k_eff is small (3 or 3*fold), unrolled at
    # trace time.  No MXU involvement (K=3 would waste >97% of the array).
    acc = jnp.broadcast_to(b, (tm, n_eff))
    for k in range(k_eff):
        acc = acc + x[:, k:k + 1] * w[k:k + 1, :]

    o_ref[...] = acc.astype(o_ref.dtype)


def embedding_forward(pos, weight, bias, *, tm_max=1024):
    """pos: (..., 3); weight: (out_dim, 3); bias: (out_dim,).

    Returns (..., out_dim), identical semantics to nn.Linear(3, out_dim)(pos).
    """
    out_dim = weight.shape[0]
    lead_shape = pos.shape[:-1]
    m = math.prod(lead_shape)

    if m == 0:  # empty leading dims: nothing to compute
        return jnp.zeros((*lead_shape, out_dim), pos.dtype)

    x2d = pos.reshape(m, 3)
    w_t = weight.astype(jnp.float32).T            # (3, out_dim)
    b1 = bias.astype(jnp.float32).reshape(1, out_dim)

    # --- choose lane-dense output layout -------------------------------------
    if out_dim < 128 and 128 % out_dim == 0:
        fold = 128 // out_dim                     # fold rows -> 128-lane output
    else:
        fold = 1

    k_eff = 3 * fold
    if fold > 1:
        n_eff = 128
        # Block-diagonal weight: fold copies of W^T along the diagonal.
        w_eff = jnp.zeros((k_eff, n_eff), jnp.float32)
        for r in range(fold):
            w_eff = w_eff.at[3 * r:3 * r + 3,
                             r * out_dim:(r + 1) * out_dim].set(w_t)
        b_eff = jnp.tile(b1, (1, fold))           # (1, 128)
    else:
        n_pad = (-out_dim) % 128                  # pad lanes to a multiple of 128
        n_eff = out_dim + n_pad
        w_eff = jnp.pad(w_t, ((0, 0), (0, n_pad)))
        b_eff = jnp.pad(b1, ((0, 0), (0, n_pad)))

    # --- tile the (folded) row axis ------------------------------------------
    m_fold = -(-m // fold)                        # rows after folding (ceil)
    tm = min(tm_max, _round_up(m_fold, 8))        # tile rows, multiple of 8
    m_fold_pad = _round_up(m_fold, tm)
    m_pad = m_fold_pad * fold

    x_pad = jnp.pad(x2d, ((0, m_pad - m), (0, 0)))
    x_fold = x_pad.reshape(m_fold_pad, k_eff)     # free reshape (row folding)

    grid = (m_fold_pad // tm,)

    out = pl.pallas_call(
        _embed_kernel,
        out_shape=jax.ShapeDtypeStruct((m_fold_pad, n_eff), pos.dtype),
        grid=grid,
        in_specs=[
            pl.BlockSpec((tm, k_eff), lambda i: (i, 0)),      # x tile, pipelined
            pl.BlockSpec((k_eff, n_eff), lambda i: (0, 0)),   # weight, resident
            pl.BlockSpec((1, n_eff), lambda i: (0, 0)),       # bias, resident
        ],
        out_specs=pl.BlockSpec((tm, n_eff), lambda i: (i, 0)),
        compiler_params=pltpu.CompilerParams(
            dimension_semantics=("parallel",),    # megacore-shardable on v7x
        ),
    )(x_fold, w_eff, b_eff)

    if fold > 1:
        y = out.reshape(m_pad, out_dim)[:m]       # free un-fold + drop row pad
    else:
        y = out[:m, :out_dim]                     # drop row + lane padding
    return y.reshape(*lead_shape, out_dim)


if __name__ == "__main__":
    key = jax.random.PRNGKey(0)
    k_pos, k_w, k_b, k_pos2, k_w2, k_b2 = jax.random.split(key, 6)

    # --- primary small check (out_dim divides 128 -> folded lane-dense path) --
    out_dim = 32
    batch, n_points = 2, 8                        # pos: (2, 8, 3)
    bound = 1.0 / (3.0 ** 0.5)
    weight = jax.random.uniform(k_w, (out_dim, 3), jnp.float32, -bound, bound)
    bias = jax.random.uniform(k_b, (out_dim,), jnp.float32, -bound, bound)
    pos = jax.random.normal(k_pos, (batch, n_points, 3), jnp.float32)

    y = jax.block_until_ready(embedding_forward(pos, weight, bias))
    y_ref = pos @ weight.T + bias
    assert y.shape == (batch, n_points, out_dim)
    assert jnp.allclose(y, y_ref, atol=1e-5, rtol=1e-5)

    # --- secondary check: multi-step grid + non-divisor out_dim (padded lanes)
    out_dim2 = 48                                 # 128 % 48 != 0 -> fold=1 path
    weight2 = jax.random.uniform(k_w2, (out_dim2, 3), jnp.float32, -bound, bound)
    bias2 = jax.random.uniform(k_b2, (out_dim2,), jnp.float32, -bound, bound)
    pos2 = jax.random.normal(k_pos2, (4, 600, 3), jnp.float32)

    y2 = jax.block_until_ready(
        embedding_forward(pos2, weight2, bias2, tm_max=128))  # grid > 1
    y2_ref = pos2 @ weight2.T + bias2
    assert y2.shape == (4, 600, out_dim2)
    assert jnp.allclose(y2, y2_ref, atol=1e-5, rtol=1e-5)

    print("KERNEL_OK")
</pallas_src>

<mosaic_0001>
module attributes {stable_mosaic.version = 11 : i64} {
  func.func @_embed_kernel(%arg0: i32, %arg1: memref<8x12xf32, #tpu.memory_space<vmem>>, %arg2: memref<12x128xf32, #tpu.memory_space<vmem>>, %arg3: memref<1x128xf32, #tpu.memory_space<vmem>>, %arg4: memref<8x128xf32, #tpu.memory_space<vmem>>) attributes {dimension_semantics = [#tpu.dimension_semantics<parallel>], iteration_bounds = array<i64: 1>, scalar_prefetch = 0 : i64, scratch_operands = 0 : i64, tpu.core_type = #tpu.core_type<tc>, window_params = [{transform_indices = @transform_0, window_bounds = array<i64: 8, 12>}, {pipeline_mode = #tpu.pipeline_mode<synchronous>, transform_indices = @transform_1, window_bounds = array<i64: 12, 128>}, {pipeline_mode = #tpu.pipeline_mode<synchronous>, transform_indices = @transform_2, window_bounds = array<i64: 1, 128>}, {transform_indices = @transform_3, window_bounds = array<i64: 8, 128>}]} {
    %c0 = arith.constant 0 : index
    %c0_0 = arith.constant 0 : index
    %0 = vector.load %arg1[%c0, %c0_0] : memref<8x12xf32, #tpu.memory_space<vmem>>, vector<8x12xf32>
    %c0_1 = arith.constant 0 : index
    %c0_2 = arith.constant 0 : index
    %1 = vector.load %arg2[%c0_1, %c0_2] : memref<12x128xf32, #tpu.memory_space<vmem>>, vector<12x128xf32>
    %c0_3 = arith.constant 0 : index
    %c0_4 = arith.constant 0 : index
    %2 = vector.load %arg3[%c0_3, %c0_4] : memref<1x128xf32, #tpu.memory_space<vmem>>, vector<1x128xf32>
    %3 = vector.shape_cast %2 : vector<1x128xf32> to vector<1x128xf32>
    %4 = vector.broadcast %3 : vector<1x128xf32> to vector<8x128xf32>
    %5 = vector.extract_strided_slice %0 {offsets = [0, 0], sizes = [8, 1], strides = [1, 1]} : vector<8x12xf32> to vector<8x1xf32>
    %6 = vector.extract_strided_slice %1 {offsets = [0, 0], sizes = [1, 128], strides = [1, 1]} : vector<12x128xf32> to vector<1x128xf32>
    %7 = vector.broadcast %5 : vector<8x1xf32> to vector<8x128xf32>
    %8 = vector.broadcast %6 : vector<1x128xf32> to vector<8x128xf32>
    %9 = arith.mulf %7, %8 : vector<8x128xf32>
    %10 = arith.addf %4, %9 : vector<8x128xf32>
    %11 = vector.extract_strided_slice %0 {offsets = [0, 1], sizes = [8, 1], strides = [1, 1]} : vector<8x12xf32> to vector<8x1xf32>
    %12 = vector.extract_strided_slice %1 {offsets = [1, 0], sizes = [1, 128], strides = [1, 1]} : vector<12x128xf32> to vector<1x128xf32>
    %13 = vector.broadcast %11 : vector<8x1xf32> to vector<8x128xf32>
    %14 = vector.broadcast %12 : vector<1x128xf32> to vector<8x128xf32>
    %15 = arith.mulf %13, %14 : vector<8x128xf32>
    %16 = arith.addf %10, %15 : vector<8x128xf32>
    %17 = vector.extract_strided_slice %0 {offsets = [0, 2], sizes = [8, 1], strides = [1, 1]} : vector<8x12xf32> to vector<8x1xf32>
    %18 = vector.extract_strided_slice %1 {offsets = [2, 0], sizes = [1, 128], strides = [1, 1]} : vector<12x128xf32> to vector<1x128xf32>
    %19 = vector.broadcast %17 : vector<8x1xf32> to vector<8x128xf32>
    %20 = vector.broadcast %18 : vector<1x128xf32> to vector<8x128xf32>
    %21 = arith.mulf %19, %20 : vector<8x128xf32>
    %22 = arith.addf %16, %21 : vector<8x128xf32>
    %23 = vector.extract_strided_slice %0 {offsets = [0, 3], sizes = [8, 1], strides = [1, 1]} : vector<8x12xf32> to vector<8x1xf32>
    %24 = vector.extract_strided_slice %1 {offsets = [3, 0], sizes = [1, 128], strides = [1, 1]} : vector<12x128xf32> to vector<1x128xf32>
    %25 = vector.broadcast %23 : vector<8x1xf32> to vector<8x128xf32>
    %26 = vector.broadcast %24 : vector<1x128xf32> to vector<8x128xf32>
    %27 = arith.mulf %25, %26 : vector<8x128xf32>
    %28 = arith.addf %22, %27 : vector<8x128xf32>
    %29 = vector.extract_strided_slice %0 {offsets = [0, 4], sizes = [8, 1], strides = [1, 1]} : vector<8x12xf32> to vector<8x1xf32>
    %30 = vector.extract_strided_slice %1 {offsets = [4, 0], sizes = [1, 128], strides = [1, 1]} : vector<12x128xf32> to vector<1x128xf32>
    %31 = vector.broadcast %29 : vector<8x1xf32> to vector<8x128xf32>
    %32 = vector.broadcast %30 : vector<1x128xf32> to vector<8x128xf32>
    %33 = arith.mulf %31, %32 : vector<8x128xf32>
    %34 = arith.addf %28, %33 : vector<8x128xf32>
    %35 = vector.extract_strided_slice %0 {offsets = [0, 5], sizes = [8, 1], strides = [1, 1]} : vector<8x12xf32> to vector<8x1xf32>
    %36 = vector.extract_strided_slice %1 {offsets = [5, 0], sizes = [1, 128], strides = [1, 1]} : vector<12x128xf32> to vector<1x128xf32>
    %37 = vector.broadcast %35 : vector<8x1xf32> to vector<8x128xf32>
    %38 = vector.broadcast %36 : vector<1x128xf32> to vector<8x128xf32>
    %39 = arith.mulf %37, %38 : vector<8x128xf32>
    %40 = arith.addf %34, %39 : vector<8x128xf32>
    %41 = vector.extract_strided_slice %0 {offsets = [0, 6], sizes = [8, 1], strides = [1, 1]} : vector<8x12xf32> to vector<8x1xf32>
    %42 = vector.extract_strided_slice %1 {offsets = [6, 0], sizes = [1, 128], strides = [1, 1]} : vector<12x128xf32> to vector<1x128xf32>
    %43 = vector.broadcast %41 : vector<8x1xf32> to vector<8x128xf32>
    %44 = vector.broadcast %42 : vector<1x128xf32> to vector<8x128xf32>
    %45 = arith.mulf %43, %44 : vector<8x128xf32>
    %46 = arith.addf %40, %45 : vector<8x128xf32>
    %47 = vector.extract_strided_slice %0 {offsets = [0, 7], sizes = [8, 1], strides = [1, 1]} : vector<8x12xf32> to vector<8x1xf32>
    %48 = vector.extract_strided_slice %1 {offsets = [7, 0], sizes = [1, 128], strides = [1, 1]} : vector<12x128xf32> to vector<1x128xf32>
    %49 = vector.broadcast %47 : vector<8x1xf32> to vector<8x128xf32>
    %50 = vector.broadcast %48 : vector<1x128xf32> to vector<8x128xf32>
    %51 = arith.mulf %49, %50 : vector<8x128xf32>
    %52 = arith.addf %46, %51 : vector<8x128xf32>
    %53 = vector.extract_strided_slice %0 {offsets = [0, 8], sizes = [8, 1], strides = [1, 1]} : vector<8x12xf32> to vector<8x1xf32>
    %54 = vector.extract_strided_slice %1 {offsets = [8, 0], sizes = [1, 128], strides = [1, 1]} : vector<12x128xf32> to vector<1x128xf32>
    %55 = vector.broadcast %53 : vector<8x1xf32> to vector<8x128xf32>
    %56 = vector.broadcast %54 : vector<1x128xf32> to vector<8x128xf32>
    %57 = arith.mulf %55, %56 : vector<8x128xf32>
    %58 = arith.addf %52, %57 : vector<8x128xf32>
    %59 = vector.extract_strided_slice %0 {offsets = [0, 9], sizes = [8, 1], strides = [1, 1]} : vector<8x12xf32> to vector<8x1xf32>
    %60 = vector.extract_strided_slice %1 {offsets = [9, 0], sizes = [1, 128], strides = [1, 1]} : vector<12x128xf32> to vector<1x128xf32>
    %61 = vector.broadcast %59 : vector<8x1xf32> to vector<8x128xf32>
    %62 = vector.broadcast %60 : vector<1x128xf32> to vector<8x128xf32>
    %63 = arith.mulf %61, %62 : vector<8x128xf32>
    %64 = arith.addf %58, %63 : vector<8x128xf32>
    %65 = vector.extract_strided_slice %0 {offsets = [0, 10], sizes = [8, 1], strides = [1, 1]} : vector<8x12xf32> to vector<8x1xf32>
    %66 = vector.extract_strided_slice %1 {offsets = [10, 0], sizes = [1, 128], strides = [1, 1]} : vector<12x128xf32> to vector<1x128xf32>
    %67 = vector.broadcast %65 : vector<8x1xf32> to vector<8x128xf32>
    %68 = vector.broadcast %66 : vector<1x128xf32> to vector<8x128xf32>
    %69 = arith.mulf %67, %68 : vector<8x128xf32>
    %70 = arith.addf %64, %69 : vector<8x128xf32>
    %71 = vector.extract_strided_slice %0 {offsets = [0, 11], sizes = [8, 1], strides = [1, 1]} : vector<8x12xf32> to vector<8x1xf32>
    %72 = vector.extract_strided_slice %1 {offsets = [11, 0], sizes = [1, 128], strides = [1, 1]} : vector<12x128xf32> to vector<1x128xf32>
    %73 = vector.broadcast %71 : vector<8x1xf32> to vector<8x128xf32>
    %74 = vector.broadcast %72 : vector<1x128xf32> to vector<8x128xf32>
    %75 = arith.mulf %73, %74 : vector<8x128xf32>
    %76 = arith.addf %70, %75 : vector<8x128xf32>
    %c0_5 = arith.constant 0 : index
    %c0_6 = arith.constant 0 : index
    %77 = vector.load %arg4[%c0_5, %c0_6] : memref<8x128xf32, #tpu.memory_space<vmem>>, vector<8x128xf32>
    tpu.vector_store %arg4[%c0_5, %c0_6], %76 {strides = array<i32>} : memref<8x128xf32, #tpu.memory_space<vmem>>, vector<8x128xf32>,
    return
  }
  func.func @transform_0(%arg0: i32) -> (i32, i32) {
    %c0_i32 = arith.constant 0 : i32
    %c0_i32_0 = arith.constant 0 : i32
    return %arg0, %c0_i32 : i32, i32
  }
  func.func @transform_1(%arg0: i32) -> (i32, i32) {
    %c0_i32 = arith.constant 0 : i32
    %c0_i32_0 = arith.constant 0 : i32
    %c0_i32_1 = arith.constant 0 : i32
    return %c0_i32, %c0_i32_0 : i32, i32
  }
  func.func @transform_2(%arg0: i32) -> (i32, i32) {
    %c0_i32 = arith.constant 0 : i32
    %c0_i32_0 = arith.constant 0 : i32
    %c0_i32_1 = arith.constant 0 : i32
    return %c0_i32, %c0_i32_0 : i32, i32
  }
  func.func @transform_3(%arg0: i32) -> (i32, i32) {
    %c0_i32 = arith.constant 0 : i32
    %c0_i32_0 = arith.constant 0 : i32
    return %arg0, %c0_i32 : i32, i32
  }
}

</mosaic_0001>

<llo_original>
// kernel: tpu_custom_call.1
$region0: #{tpu_custom_call.1}
  #allocation0 [shape = 'u32[]', space=smem, size = 0x4, offset = 0x4, fixed_abs, tag = 'smem constant byte address 0x4 - core index']
  #allocation1 [shape = 'u32[144,128]{1,0:T(1,128)}', space=vmem, size = 0x12000, scoped, tag = 'internal scratch']
  %s0 = inlined_call_operand.hbm [shape: f32[8,12], index: 0, kind: input, shape index: {}]
  %s1 = inlined_call_operand.hbm [shape: f32[12,128], index: 1, kind: input, shape index: {}]
  %s2 = inlined_call_operand.vmem [shape: f32[1,128], index: 2, kind: input, shape index: {}]
  %s3 = inlined_call_operand.hbm [shape: f32[8,128], index: 3, kind: output, shape index: {}]
  %s4 = sld [smem:[#allocation0]]
  $region30: #{tpu_custom_call.1} parent=0
    _
  %s6 = ssub.s32 1, %s4
  %s7 = scalar_select 0, %s6, %s4
  $region1: #{tpu_custom_call.1} parent=0
    #allocation2 [shape = 'u8[4096]{0}', space=vmem, size = 0x1000, scoped, tag = 'input window, operand 0, single buffered']
    #allocation3 [shape = 's32[1]{0}', space=sflag, size = 0x4, scoped, tag = 'scoped memory for tpu_custom_call.1']
    #allocation4 [shape = 's32[1]{0}', space=sflag, size = 0x4, scoped, tag = 'scoped memory for tpu_custom_call.1']
    #allocation5 [shape = 'u8[8192]{0}', space=vmem, size = 0x2000, scoped, tag = 'input window, operand 1, single buffered']
    #allocation6 [shape = 's32[1]{0}', space=sflag, size = 0x4, scoped, tag = 'scoped memory for tpu_custom_call.1']
    #allocation7 [shape = 'u8[4096]{0}', space=vmem, size = 0x1000, scoped, tag = 'output window, operand 0, single buffered']
    %8 = vsyncpa [#allocation3], 0
    %9 = vsyncpa [#allocation6], 0
    %10 = vsyncpa [#allocation4], 0
    // Predicated region
    $region2: #{tpu_custom_call.1} parent=1 // pred_check
      _
    $region3: #{tpu_custom_call.1} parent=1 // pred_check_branch
      %12 = sbr.rel (0) target = $region5
    $region4: #{tpu_custom_call.1} parent=1 // pred_region
      %s14 = ssub.s32 128, 128
      %15 = vsyncadd [#allocation3], %s14
      %s17 = sshll.u32 [#allocation2], 4
      %s18 = int_to_ptr.vmem [resolvable:$true] %s17
      %20 = dma.hbm_to_vmem [thread:$0]  %s0, 128, %s18, [#allocation3]
    $region5: #{tpu_custom_call.1} parent=1 // pred_fallthru
      _
    // Predicated region
    $region6: #{tpu_custom_call.1} parent=1 // pred_check
      _
    $region7: #{tpu_custom_call.1} parent=1 // pred_check_branch
      %22 = sbr.rel (0) target = $region9
    $region8: #{tpu_custom_call.1} parent=1 // pred_region
      %s24 = ssub.s32 256, 256
      %25 = vsyncadd [#allocation6], %s24
      %s26 = sshll.u32 [#allocation5], 4
      %s27 = int_to_ptr.vmem [resolvable:$true] %s26
      %32 = dma.hbm_to_vmem [thread:$0]  %s1, 256, %s27, [#allocation6], 128, 128, 8
    $region9: #{tpu_custom_call.1} parent=1 // pred_fallthru
      _
    // Predicated region
    $region10: #{tpu_custom_call.1} parent=1 // pred_check
      _
    $region11: #{tpu_custom_call.1} parent=1 // pred_check_branch
      %34 = sbr.rel (0) target = $region13
    $region12: #{tpu_custom_call.1} parent=1 // pred_region
      _
    $region13: #{tpu_custom_call.1} parent=1 // pred_fallthru
      _
    // Predicated region
    $region14: #{tpu_custom_call.1} parent=1 // pred_check
      _
    $region15: #{tpu_custom_call.1} parent=1 // pred_check_branch
      %36 = sbr.rel (0) target = $region17
    $region16: #{tpu_custom_call.1} parent=1 // pred_region
      %37 = dma.done [#allocation3], 128
    $region17: #{tpu_custom_call.1} parent=1 // pred_fallthru
      _
    // Predicated region
    $region18: #{tpu_custom_call.1} parent=1 // pred_check
      _
    $region19: #{tpu_custom_call.1} parent=1 // pred_check_branch
      %39 = sbr.rel (0) target = $region21
    $region20: #{tpu_custom_call.1} parent=1 // pred_region
      %40 = dma.done [#allocation6], 256
    $region21: #{tpu_custom_call.1} parent=1 // pred_fallthru
      _
    %v41 = vld [vmem:[#allocation2] sm:$0xff]
    %v42 = vld [vmem:[#allocation5] sm:$0xff]
    %v43 = vld [vmem:[#allocation5 + $0x8] sm:$0xf]
    %v44 = vld [vmem:[%s2] sm:$0x1]
    %v46 = vlaneseq
    %v47 = vshrl.u32 %v46, 7
    %v48 = vsub.s32 0, %v47
    %v49 = vrot.slane %v44, %v48
    %52 = vset.pattern.permute.xlu0 0
    %53 = vperm.xlu0 %52, %v41
    %v54 = vpop.permute.xlu0 %53
    %v56 = vlaneseq
    %v57 = vshrl.u32 %v56, 7
    %v58 = vsub.s32 0, %v57
    %v59 = vrot.slane %v42, %v58
    %v60 = vmul.f32 %v54, %v59
    %v61 = vadd.f32 %v49, %v60
    %62 = vset.pattern.permute.xlu0 1
    %63 = vperm.xlu0 %62, %v41
    %v64 = vpop.permute.xlu0 %63
    %v66 = vlaneseq
    %v67 = vshrl.u32 %v66, 7
    %v68 = vsub.s32 1, %v67
    %v69 = vrot.slane %v42, %v68
    %v70 = vmul.f32 %v64, %v69
    %v71 = vadd.f32 %v61, %v70
    %72 = vset.pattern.permute.xlu0 2
    %73 = vperm.xlu0 %72, %v41
    %v74 = vpop.permute.xlu0 %73
    %v76 = vlaneseq
    %v77 = vshrl.u32 %v76, 7
    %v78 = vsub.s32 2, %v77
    %v79 = vrot.slane %v42, %v78
    %v80 = vmul.f32 %v74, %v79
    %v81 = vadd.f32 %v71, %v80
    %82 = vset.pattern.permute.xlu0 3
    %83 = vperm.xlu0 %82, %v41
    %v84 = vpop.permute.xlu0 %83
    %v86 = vlaneseq
    %v87 = vshrl.u32 %v86, 7
    %v88 = vsub.s32 3, %v87
    %v89 = vrot.slane %v42, %v88
    %v90 = vmul.f32 %v84, %v89
    %v91 = vadd.f32 %v81, %v90
    %92 = vset.pattern.permute.xlu0 4
    %93 = vperm.xlu0 %92, %v41
    %v94 = vpop.permute.xlu0 %93
    %v96 = vlaneseq
    %v97 = vshrl.u32 %v96, 7
    %v98 = vsub.s32 4, %v97
    %v99 = vrot.slane %v42, %v98
    %v100 = vmul.f32 %v94, %v99
    %v101 = vadd.f32 %v91, %v100
    %102 = vset.pattern.permute.xlu0 5
    %103 = vperm.xlu0 %102, %v41
    %v104 = vpop.permute.xlu0 %103
    %v106 = vlaneseq
    %v107 = vshrl.u32 %v106, 7
    %v108 = vsub.s32 5, %v107
    %v109 = vrot.slane %v42, %v108
    %v110 = vmul.f32 %v104, %v109
    %v111 = vadd.f32 %v101, %v110
    %112 = vset.pattern.permute.xlu0 6
    %113 = vperm.xlu0 %112, %v41
    %v114 = vpop.permute.xlu0 %113
    %v116 = vlaneseq
    %v117 = vshrl.u32 %v116, 7
    %v118 = vsub.s32 6, %v117
    %v119 = vrot.slane %v42, %v118
    %v120 = vmul.f32 %v114, %v119
    %v121 = vadd.f32 %v111, %v120
    %122 = vset.pattern.permute.xlu0 7
    %123 = vperm.xlu0 %122, %v41
    %v124 = vpop.permute.xlu0 %123
    %v126 = vlaneseq
    %v127 = vshrl.u32 %v126, 7
    %v128 = vsub.s32 7, %v127
    %v129 = vrot.slane %v42, %v128
    %v130 = vmul.f32 %v124, %v129
    %v131 = vadd.f32 %v121, %v130
    %132 = vset.pattern.permute.xlu0 8
    %133 = vperm.xlu0 %132, %v41
    %v134 = vpop.permute.xlu0 %133
    %v136 = vlaneseq
    %v137 = vshrl.u32 %v136, 7
    %v138 = vsub.s32 0, %v137
    %v139 = vrot.slane %v43, %v138
    %v140 = vmul.f32 %v134, %v139
    %v141 = vadd.f32 %v131, %v140
    %142 = vset.pattern.permute.xlu0 9
    %143 = vperm.xlu0 %142, %v41
    %v144 = vpop.permute.xlu0 %143
    %v146 = vlaneseq
    %v147 = vshrl.u32 %v146, 7
    %v148 = vsub.s32 1, %v147
    %v149 = vrot.slane %v43, %v148
    %v150 = vmul.f32 %v144, %v149
    %v151 = vadd.f32 %v141, %v150
    %152 = vset.pattern.permute.xlu0 10
    %153 = vperm.xlu0 %152, %v41
    %v154 = vpop.permute.xlu0 %153
    %v156 = vlaneseq
    %v157 = vshrl.u32 %v156, 7
    %v158 = vsub.s32 2, %v157
    %v159 = vrot.slane %v43, %v158
    %v160 = vmul.f32 %v154, %v159
    %v161 = vadd.f32 %v151, %v160
    %162 = vset.pattern.permute.xlu0 11
    %163 = vperm.xlu0 %162, %v41
    %v164 = vpop.permute.xlu0 %163
    %v166 = vlaneseq
    %v167 = vshrl.u32 %v166, 7
    %v168 = vsub.s32 3, %v167
    %v169 = vrot.slane %v43, %v168
    %v170 = vmul.f32 %v164, %v169
    %v171 = vadd.f32 %v161, %v170
    %172 = vst [vmem:[#allocation7] sm:$0xff] %v171
    // Predicated region
    $region22: #{tpu_custom_call.1} parent=1 // pred_check
      _
    $region23: #{tpu_custom_call.1} parent=1 // pred_check_branch
      %174 = sbr.rel (0) target = $region25
    $region24: #{tpu_custom_call.1} parent=1 // pred_region
      %s176 = ssub.s32 128, 128
      %177 = vsyncadd [#allocation4], %s176
      %s179 = sshll.u32 [#allocation7], 4
      %s180 = int_to_ptr.vmem [resolvable:$true] %s179
      %182 = dma.vmem_to_hbm [thread:$0]  %s180, 128, %s3, [#allocation4]
    $region25: #{tpu_custom_call.1} parent=1 // pred_fallthru
      _
    // Predicated region
    $region26: #{tpu_custom_call.1} parent=1 // pred_check
      _
    $region27: #{tpu_custom_call.1} parent=1 // pred_check_branch
      %184 = sbr.rel (0) target = $region29
    $region28: #{tpu_custom_call.1} parent=1 // pred_region
      %185 = dma.done [#allocation4], 128
    $region29: #{tpu_custom_call.1} parent=1 // pred_fallthru
      _
    %186 = vsyncpa [#allocation3], 1
    %187 = vsyncpa [#allocation6], 1
    %188 = vsyncpa [#allocation4], 1

</llo_original>
